<compile_context>
chip_gen: v7x
topology: tpu7x:2x2x1
jax: 0.10.0
libtpu: 0.0.40
codegen_flags: <defaults>
</compile_context>

<pallas_src>
import jax
import jax.numpy as jnp
from jax.experimental import pallas as pl
from jax.experimental.pallas import tpu as pltpu


def _round_up(v, m):
    return (v + m - 1) // m * m


def _residual_linear_kernel(x_ref, w_ref, b_ref, o_ref):
    # x_ref: (tm, Hp) input dtype, w_ref: (Hp, tn) bf16, b_ref: (1, tn) f32,
    # o_ref: (tm, tn) input dtype.
    tn = o_ref.shape[-1]
    col = pl.multiple_of(pl.program_id(1) * tn, 128)

    x = x_ref[...]
    # bf16 x bf16 MXU matmul, f32 accumulation.
    y = jnp.dot(x.astype(jnp.bfloat16), w_ref[...],
                preferred_element_type=jnp.float32)
    # Residual + bias stay in f32.
    x_res = x_ref[:, pl.ds(col, tn)].astype(jnp.float32)
    o_ref[...] = (x_res + y + b_ref[...]).astype(o_ref.dtype)


def residual_skip_connection(x, w, b, *, tm=512, tn=None):
    """out = x + (x @ w + b).  x: [B, S, H], w: [H, H], b: [H]."""
    B, S, H = x.shape
    M = B * S

    # Lane-dense hidden dim (multiple of 128), sublane-aligned row tile.
    Hp = _round_up(H, 128)
    tm = max(16, min(_round_up(tm, 16), _round_up(M, 16)))
    Mp = _round_up(M, tm)
    if tn is None:
        # Keep the full weight resident for moderate H; tile N for large H so
        # the resident weight block stays bounded (v7x has only 64 MiB VMEM).
        tn = Hp if Hp <= 1024 else 1024
    tn = _round_up(min(tn, Hp), 128)
    assert Hp % tn == 0
    grid = (Mp // tm, Hp // tn)

    # Zero padding is exact: padded x columns are 0 and padded W rows/cols
    # are 0, so the valid output slab is unchanged and simply sliced out.
    x2 = x.reshape(M, H)
    if (Mp, Hp) != (M, H):
        x2 = jnp.pad(x2, ((0, Mp - M), (0, Hp - H)))
    w2 = w if Hp == H else jnp.pad(w, ((0, Hp - H), (0, Hp - H)))
    w2 = w2.astype(jnp.bfloat16)                         # halve weight traffic
    b2 = (b if Hp == H else jnp.pad(b, (0, Hp - H)))
    b2 = b2.astype(jnp.float32).reshape(1, Hp)

    itemsize = x.dtype.itemsize
    # Rough tile working set: double-buffered operands + in-kernel temporaries.
    est = (2 * tm * Hp * itemsize            # x
           + 2 * Hp * tn * 2                 # weight (bf16)
           + 2 * tn * 4                      # bias
           + 2 * tm * tn * itemsize          # out
           + tm * Hp * 2 + 3 * tm * tn * 4)  # temporaries
    vmem_limit = int(min(max(2 * est, 32 * 1024 * 1024), 64 * 1024 * 1024))

    def _call(single_buffer_consts):
        const_mode = {}
        if single_buffer_consts and grid[1] == 1:
            # Weight / bias block index is constant across the grid -> no
            # need to double-buffer them (saves VMEM, esp. on v7x).
            const_mode = dict(pipeline_mode=pl.Buffered(1))
        in_specs = [
            pl.BlockSpec((tm, Hp), lambda i, j: (i, 0)),                 # x
            pl.BlockSpec((Hp, tn), lambda i, j: (0, j), **const_mode),   # W
            pl.BlockSpec((1, tn), lambda i, j: (0, j), **const_mode),    # b
        ]
        out_spec = pl.BlockSpec((tm, tn), lambda i, j: (i, j))
        return pl.pallas_call(
            _residual_linear_kernel,
            out_shape=jax.ShapeDtypeStruct((Mp, Hp), x.dtype),
            grid_spec=pltpu.PrefetchScalarGridSpec(
                num_scalar_prefetch=0,
                grid=grid,
                in_specs=in_specs,
                out_specs=out_spec,
            ),
            compiler_params=pltpu.CompilerParams(
                dimension_semantics=("parallel", "parallel"),
                vmem_limit_bytes=vmem_limit,
            ),
        )(x2, w2, b2)

    try:
        out2 = _call(True)
    except Exception:
        # pipeline_mode / pl.Buffered(1) not supported on this jax version:
        # fall back to default double buffering (functionally identical).
        out2 = _call(False)

    return out2[:M, :H].reshape(B, S, H)


def _reference(x, w, b):
    # Same bf16 rounding of the matmul operands as the kernel, f32 accumulate.
    xq = x.astype(jnp.bfloat16).astype(jnp.float32)
    wq = w.astype(jnp.bfloat16).astype(jnp.float32)
    return x + (jnp.einsum("bsh,hk->bsk", xq, wq,
                           preferred_element_type=jnp.float32) + b)


if __name__ == "__main__":
    key = jax.random.PRNGKey(0)
    kx, kw, kb = jax.random.split(key, 3)

    # Small shapes consistent with the SegFormer residual block.
    B, S, H = 2, 8, 32
    x = jax.random.normal(kx, (B, S, H), dtype=jnp.float32)
    w = jax.random.normal(kw, (H, H), dtype=jnp.float32) * 0.02
    b = jax.random.normal(kb, (H,), dtype=jnp.float32) * 0.02

    out = residual_skip_connection(x, w, b)
    jax.block_until_ready(out)
    ref = _reference(x, w, b)
    assert jnp.allclose(out, ref, atol=1e-3, rtol=1e-3), float(
        jnp.max(jnp.abs(out - ref)))

    # Second shape exercising ragged-M padding and the N-tiled (2-D grid) path.
    B2, S2, H2 = 1, 40, 160
    k2 = jax.random.split(kb, 3)
    x_b = jax.random.normal(k2[0], (B2, S2, H2), dtype=jnp.float32)
    w_b = jax.random.normal(k2[1], (H2, H2), dtype=jnp.float32) * 0.02
    b_b = jax.random.normal(k2[2], (H2,), dtype=jnp.float32) * 0.02
    out_b = residual_skip_connection(x_b, w_b, b_b, tn=128)
    jax.block_until_ready(out_b)
    ref_b = _reference(x_b, w_b, b_b)
    assert jnp.allclose(out_b, ref_b, atol=1e-3, rtol=1e-3), float(
        jnp.max(jnp.abs(out_b - ref_b)))

    print("KERNEL_OK")
</pallas_src>

<mosaic_0001>
module attributes {stable_mosaic.version = 11 : i64} {
  func.func @_residual_linear_kernel(%arg0: i32, %arg1: i32, %arg2: memref<16x128xf32, #tpu.memory_space<vmem>>, %arg3: memref<128x128xbf16, #tpu.memory_space<vmem>>, %arg4: memref<1x128xf32, #tpu.memory_space<vmem>>, %arg5: memref<16x128xf32, #tpu.memory_space<vmem>>) attributes {dimension_semantics = [#tpu.dimension_semantics<parallel>, #tpu.dimension_semantics<parallel>], iteration_bounds = array<i64: 1, 1>, scalar_prefetch = 0 : i64, scratch_operands = 0 : i64, tpu.core_type = #tpu.core_type<tc>, window_params = [{transform_indices = @transform_0, window_bounds = array<i64: 16, 128>}, {pipeline_mode = #tpu.pipeline_mode<synchronous>, transform_indices = @transform_1, window_bounds = array<i64: 128, 128>}, {pipeline_mode = #tpu.pipeline_mode<synchronous>, transform_indices = @transform_2, window_bounds = array<i64: 1, 128>}, {transform_indices = @transform_3, window_bounds = array<i64: 16, 128>}]} {
    %c128_i32 = arith.constant 128 : i32
    %0 = arith.muli %arg1, %c128_i32 : i32
    %1 = tpu.assume_multiple %0, 128 : i32
    %c0 = arith.constant 0 : index
    %c0_0 = arith.constant 0 : index
    %2 = vector.load %arg2[%c0, %c0_0] : memref<16x128xf32, #tpu.memory_space<vmem>>, vector<16x128xf32>
    %3 = arith.truncf %2 : vector<16x128xf32> to vector<16x128xbf16>
    %c0_1 = arith.constant 0 : index
    %c0_2 = arith.constant 0 : index
    %4 = vector.load %arg3[%c0_1, %c0_2] : memref<128x128xbf16, #tpu.memory_space<vmem>>, vector<128x128xbf16>
    %cst = arith.constant dense<0.000000e+00> : vector<16x128xf32>
    %5 = tpu.matmul %3, %4, %cst {dimension_numbers = #tpu.dot_dimension_numbers<[1], [0], [0], [1], [0, 0, 1, 1], [], []>} : vector<16x128xbf16>, vector<128x128xbf16>, vector<16x128xf32> -> vector<16x128xf32>
    %c0_3 = arith.constant 0 : index
    %6 = arith.index_cast %1 : i32 to index
    %7 = vector.load %arg2[%c0_3, %6] : memref<16x128xf32, #tpu.memory_space<vmem>>, vector<16x128xf32>
    %8 = arith.addf %7, %5 : vector<16x128xf32>
    %c0_4 = arith.constant 0 : index
    %c0_5 = arith.constant 0 : index
    %9 = vector.load %arg4[%c0_4, %c0_5] : memref<1x128xf32, #tpu.memory_space<vmem>>, vector<1x128xf32>
    %10 = vector.broadcast %9 : vector<1x128xf32> to vector<16x128xf32>
    %11 = arith.addf %8, %10 : vector<16x128xf32>
    %c0_6 = arith.constant 0 : index
    %c0_7 = arith.constant 0 : index
    %12 = vector.load %arg5[%c0_6, %c0_7] : memref<16x128xf32, #tpu.memory_space<vmem>>, vector<16x128xf32>
    tpu.vector_store %arg5[%c0_6, %c0_7], %11 {strides = array<i32>} : memref<16x128xf32, #tpu.memory_space<vmem>>, vector<16x128xf32>,
    return
  }
  func.func @transform_0(%arg0: i32, %arg1: i32) -> (i32, i32) {
    %c0_i32 = arith.constant 0 : i32
    %c0_i32_0 = arith.constant 0 : i32
    return %arg0, %c0_i32 : i32, i32
  }
  func.func @transform_1(%arg0: i32, %arg1: i32) -> (i32, i32) {
    %c0_i32 = arith.constant 0 : i32
    %c0_i32_0 = arith.constant 0 : i32
    return %c0_i32, %arg1 : i32, i32
  }
  func.func @transform_2(%arg0: i32, %arg1: i32) -> (i32, i32) {
    %c0_i32 = arith.constant 0 : i32
    %c0_i32_0 = arith.constant 0 : i32
    return %c0_i32, %arg1 : i32, i32
  }
  func.func @transform_3(%arg0: i32, %arg1: i32) -> (i32, i32) {
    %c0_i32 = arith.constant 0 : i32
    return %arg0, %arg1 : i32, i32
  }
}

module attributes {stable_mosaic.version = 11 : i64} {
  func.func @_residual_linear_kernel(%arg0: i32, %arg1: i32, %arg2: memref<16x128xf32, #tpu.memory_space<vmem>>, %arg3: memref<128x128xbf16, #tpu.memory_space<vmem>>, %arg4: memref<1x128xf32, #tpu.memory_space<vmem>>, %arg5: memref<16x128xf32, #tpu.memory_space<vmem>>) attributes {dimension_semantics = [#tpu.dimension_semantics<parallel>, #tpu.dimension_semantics<parallel>], iteration_bounds = array<i64: 1, 1>, scalar_prefetch = 0 : i64, scratch_operands = 0 : i64, tpu.core_type = #tpu.core_type<tc>, window_params = [{transform_indices = @transform_0, window_bounds = array<i64: 16, 128>}, {transform_indices = @transform_1, window_bounds = array<i64: 128, 128>}, {transform_indices = @transform_2, window_bounds = array<i64: 1, 128>}, {transform_indices = @transform_3, window_bounds = array<i64: 16, 128>}]} {
    %c128_i32 = arith.constant 128 : i32
    %0 = arith.muli %arg1, %c128_i32 : i32
    %1 = tpu.assume_multiple %0, 128 : i32
    %c0 = arith.constant 0 : index
    %c0_0 = arith.constant 0 : index
    %2 = vector.load %arg2[%c0, %c0_0] : memref<16x128xf32, #tpu.memory_space<vmem>>, vector<16x128xf32>
    %3 = arith.truncf %2 : vector<16x128xf32> to vector<16x128xbf16>
    %c0_1 = arith.constant 0 : index
    %c0_2 = arith.constant 0 : index
    %4 = vector.load %arg3[%c0_1, %c0_2] : memref<128x128xbf16, #tpu.memory_space<vmem>>, vector<128x128xbf16>
    %cst = arith.constant dense<0.000000e+00> : vector<16x128xf32>
    %5 = tpu.matmul %3, %4, %cst {dimension_numbers = #tpu.dot_dimension_numbers<[1], [0], [0], [1], [0, 0, 1, 1], [], []>} : vector<16x128xbf16>, vector<128x128xbf16>, vector<16x128xf32> -> vector<16x128xf32>
    %c0_3 = arith.constant 0 : index
    %6 = arith.index_cast %1 : i32 to index
    %7 = vector.load %arg2[%c0_3, %6] : memref<16x128xf32, #tpu.memory_space<vmem>>, vector<16x128xf32>
    %8 = arith.addf %7, %5 : vector<16x128xf32>
    %c0_4 = arith.constant 0 : index
    %c0_5 = arith.constant 0 : index
    %9 = vector.load %arg4[%c0_4, %c0_5] : memref<1x128xf32, #tpu.memory_space<vmem>>, vector<1x128xf32>
    %10 = vector.broadcast %9 : vector<1x128xf32> to vector<16x128xf32>
    %11 = arith.addf %8, %10 : vector<16x128xf32>
    %c0_6 = arith.constant 0 : index
    %c0_7 = arith.constant 0 : index
    %12 = vector.load %arg5[%c0_6, %c0_7] : memref<16x128xf32, #tpu.memory_space<vmem>>, vector<16x128xf32>
    tpu.vector_store %arg5[%c0_6, %c0_7], %11 {strides = array<i32>} : memref<16x128xf32, #tpu.memory_space<vmem>>, vector<16x128xf32>,
    return
  }
  func.func @transform_0(%arg0: i32, %arg1: i32) -> (i32, i32) {
    %c0_i32 = arith.constant 0 : i32
    %c0_i32_0 = arith.constant 0 : i32
    return %arg0, %c0_i32 : i32, i32
  }
  func.func @transform_1(%arg0: i32, %arg1: i32) -> (i32, i32) {
    %c0_i32 = arith.constant 0 : i32
    %c0_i32_0 = arith.constant 0 : i32
    return %c0_i32, %arg1 : i32, i32
  }
  func.func @transform_2(%arg0: i32, %arg1: i32) -> (i32, i32) {
    %c0_i32 = arith.constant 0 : i32
    %c0_i32_0 = arith.constant 0 : i32
    return %c0_i32, %arg1 : i32, i32
  }
  func.func @transform_3(%arg0: i32, %arg1: i32) -> (i32, i32) {
    %c0_i32 = arith.constant 0 : i32
    return %arg0, %arg1 : i32, i32
  }
}

</mosaic_0001>

<llo_original>
// kernel: tpu_custom_call.1
$region0: #{tpu_custom_call.1}
  #allocation0 [shape = 'u32[]', space=smem, size = 0x4, offset = 0x4, fixed_abs, tag = 'smem constant byte address 0x4 - core index']
  #allocation1 [shape = 'u32[144,128]{1,0:T(1,128)}', space=vmem, size = 0x12000, scoped, tag = 'internal scratch']
  %s0 = inlined_call_operand.hbm [shape: f32[16,128], index: 0, kind: input, shape index: {}]
  %s1 = inlined_call_operand.hbm [shape: bf16[128,128], index: 1, kind: input, shape index: {}]
  %s2 = inlined_call_operand.vmem [shape: f32[1,128], index: 2, kind: input, shape index: {}]
  %s3 = inlined_call_operand.hbm [shape: f32[16,128], index: 3, kind: output, shape index: {}]
  %s4 = sld [smem:[#allocation0]]
  $region30: #{tpu_custom_call.1} parent=0
    _
  %s6 = ssub.s32 1, %s4
  %s7 = scalar_select 0, %s6, %s4
  $region1: #{tpu_custom_call.1} parent=0
    #allocation2 [shape = 'u8[8192]{0}', space=vmem, size = 0x2000, scoped, tag = 'input window, operand 0, single buffered']
    #allocation3 [shape = 's32[1]{0}', space=sflag, size = 0x4, scoped, tag = 'scoped memory for tpu_custom_call.1']
    #allocation4 [shape = 's32[1]{0}', space=sflag, size = 0x4, scoped, tag = 'scoped memory for tpu_custom_call.1']
    #allocation5 [shape = 'u8[32768]{0}', space=vmem, size = 0x8000, scoped, tag = 'input window, operand 1, single buffered']
    #allocation6 [shape = 's32[1]{0}', space=sflag, size = 0x4, scoped, tag = 'scoped memory for tpu_custom_call.1']
    #allocation7 [shape = 'u8[8192]{0}', space=vmem, size = 0x2000, scoped, tag = 'output window, operand 0, single buffered']
    %8 = vsyncpa [#allocation3], 0
    %9 = vsyncpa [#allocation6], 0
    %10 = vsyncpa [#allocation4], 0
    // Predicated region
    $region2: #{tpu_custom_call.1} parent=1 // pred_check
      _
    $region3: #{tpu_custom_call.1} parent=1 // pred_check_branch
      %12 = sbr.rel (0) target = $region5
    $region4: #{tpu_custom_call.1} parent=1 // pred_region
      %s14 = ssub.s32 256, 256
      %15 = vsyncadd [#allocation3], %s14
      %s16 = sshll.u32 [#allocation2], 4
      %s17 = int_to_ptr.vmem [resolvable:$true] %s16
      %22 = dma.hbm_to_vmem [thread:$0]  %s0, 256, %s17, [#allocation3], 128, 128, 8
    $region5: #{tpu_custom_call.1} parent=1 // pred_fallthru
      _
    // Predicated region
    $region6: #{tpu_custom_call.1} parent=1 // pred_check
      _
    $region7: #{tpu_custom_call.1} parent=1 // pred_check_branch
      %24 = sbr.rel (0) target = $region9
    $region8: #{tpu_custom_call.1} parent=1 // pred_region
      %s26 = ssub.s32 1024, 1024
      %27 = vsyncadd [#allocation6], %s26
      %s28 = sshll.u32 [#allocation5], 4
      %s29 = int_to_ptr.vmem [resolvable:$true] %s28
      %34 = dma.hbm_to_vmem [thread:$0]  %s1, 1024, %s29, [#allocation6], 64, 64, 4
    $region9: #{tpu_custom_call.1} parent=1 // pred_fallthru
      _
    // Predicated region
    $region10: #{tpu_custom_call.1} parent=1 // pred_check
      _
    $region11: #{tpu_custom_call.1} parent=1 // pred_check_branch
      %36 = sbr.rel (0) target = $region13
    $region12: #{tpu_custom_call.1} parent=1 // pred_region
      _
    $region13: #{tpu_custom_call.1} parent=1 // pred_fallthru
      _
    // Predicated region
    $region14: #{tpu_custom_call.1} parent=1 // pred_check
      _
    $region15: #{tpu_custom_call.1} parent=1 // pred_check_branch
      %38 = sbr.rel (0) target = $region17
    $region16: #{tpu_custom_call.1} parent=1 // pred_region
      %39 = dma.done [#allocation3], 256
    $region17: #{tpu_custom_call.1} parent=1 // pred_fallthru
      _
    // Predicated region
    $region18: #{tpu_custom_call.1} parent=1 // pred_check
      _
    $region19: #{tpu_custom_call.1} parent=1 // pred_check_branch
      %41 = sbr.rel (0) target = $region21
    $region20: #{tpu_custom_call.1} parent=1 // pred_region
      %42 = dma.done [#allocation6], 1024
    $region21: #{tpu_custom_call.1} parent=1 // pred_fallthru
      _
    %s44 = smul.u32 0, 128
    %v45 = vld [vmem:[#allocation2] sm:$0xff]
    %v46 = vld [vmem:[#allocation2 + $0x8] sm:$0xff]
    %v47 = vpack.c.bf16 %v46, %v45
    %v48 = vld [vmem:[#allocation5] sm:$0xf]
    %v49 = vld [vmem:[#allocation5 + $0x4] sm:$0xf]
    %v50 = vld [vmem:[#allocation5 + $0x8] sm:$0xf]
    %v51 = vld [vmem:[#allocation5 + $0xc] sm:$0xf]
    %v52 = vld [vmem:[#allocation5 + $0x10] sm:$0xf]
    %v53 = vld [vmem:[#allocation5 + $0x14] sm:$0xf]
    %v54 = vld [vmem:[#allocation5 + $0x18] sm:$0xf]
    %v55 = vld [vmem:[#allocation5 + $0x1c] sm:$0xf]
    %v56 = vld [vmem:[#allocation5 + $0x20] sm:$0xf]
    %v57 = vld [vmem:[#allocation5 + $0x24] sm:$0xf]
    %v58 = vld [vmem:[#allocation5 + $0x28] sm:$0xf]
    %v59 = vld [vmem:[#allocation5 + $0x2c] sm:$0xf]
    %v60 = vld [vmem:[#allocation5 + $0x30] sm:$0xf]
    %v61 = vld [vmem:[#allocation5 + $0x34] sm:$0xf]
    %v62 = vld [vmem:[#allocation5 + $0x38] sm:$0xf]
    %v63 = vld [vmem:[#allocation5 + $0x3c] sm:$0xf]
    %v80 = vunpack.c.l.b16 %v48
    %v81 = vunpack.c.l.b16 %v49
    %v82 = vunpack.c.l.b16 %v50
    %v83 = vunpack.c.l.b16 %v51
    %v84 = vunpack.c.l.b16 %v52
    %v85 = vunpack.c.l.b16 %v53
    %v86 = vunpack.c.l.b16 %v54
    %v87 = vunpack.c.l.b16 %v55
    %v88 = vunpack.c.l.b16 %v56
    %v89 = vunpack.c.l.b16 %v57
    %v90 = vunpack.c.l.b16 %v58
    %v91 = vunpack.c.l.b16 %v59
    %v92 = vunpack.c.l.b16 %v60
    %v93 = vunpack.c.l.b16 %v61
    %v94 = vunpack.c.l.b16 %v62
    %v95 = vunpack.c.l.b16 %v63
    %v96 = vpack.c.b16 %v81, %v80
    %v97 = vpack.c.b16 %v83, %v82
    %v98 = vpack.c.b16 %v85, %v84
    %v99 = vpack.c.b16 %v87, %v86
    %v100 = vpack.c.b16 %v89, %v88
    %v101 = vpack.c.b16 %v91, %v90
    %v102 = vpack.c.b16 %v93, %v92
    %v103 = vpack.c.b16 %v95, %v94
    %112 = vmatprep.subr.bf16.mxu0 0
    %113 = vmatpush1.bf16.msra.mxu0 %v96
    %114 = vmatprep.subr.bf16.mxu0 0
    %115 = vmatpush1.bf16.msra.mxu0 %v97
    %116 = vmatprep.subr.bf16.mxu0 0
    %117 = vmatpush1.bf16.msra.mxu0 %v98
    %118 = vmatprep.subr.bf16.mxu0 0
    %119 = vmatpush1.bf16.msra.mxu0 %v99
    %120 = vmatprep.subr.bf16.mxu0 0
    %121 = vmatpush1.bf16.msra.mxu0 %v100
    %122 = vmatprep.subr.bf16.mxu0 0
    %123 = vmatpush1.bf16.msra.mxu0 %v101
    %124 = vmatprep.subr.bf16.mxu0 0
    %125 = vmatpush1.bf16.msra.mxu0 %v102
    %126 = vmatprep.subr.bf16.mxu0 0
    %127 = vmatpush1.bf16.msra.mxu0 %v103
    %128 = vmatprep.subr.bf16.mxu0 0
    %129 = vmatpush1.bf16.msra.mxu0 0
    %130 = vmatprep.subr.bf16.mxu0 0
    %131 = vmatpush1.bf16.msra.mxu0 0
    %132 = vmatprep.subr.bf16.mxu0 0
    %133 = vmatpush1.bf16.msra.mxu0 0
    %134 = vmatprep.subr.bf16.mxu0 0
    %135 = vmatpush1.bf16.msra.mxu0 0
    %136 = vmatprep.subr.bf16.mxu0 0
    %137 = vmatpush1.bf16.msra.mxu0 0
    %138 = vmatprep.subr.bf16.mxu0 0
    %139 = vmatpush1.bf16.msra.mxu0 0
    %140 = vmatprep.subr.bf16.mxu0 0
    %141 = vmatpush1.bf16.msra.mxu0 0
    %142 = vmatprep.subr.bf16.mxu0 0
    %143 = vmatpush1.bf16.msra.mxu0 0
    %144 = vmatprep.mubr.bf16.mxu0 0
    %145 = vmatmul.mubr.bf16.gmra.mrb[0].mxu0 %v47
    %v146 = vpop.f32.mrb[0].mxu0
    %v147 = vadd.f32 0.0, %v146
    %v148 = vpop.f32.mrb[0].mxu0
    %v149 = vpop.f32.mrb[0].mxu0
    %v150 = vadd.f32 0.0, %v149
    %v151 = vpop.f32.mrb[0].mxu0
    %152 = vdwg.mxu0
    %s153 = sshra.s32 %s44, 7
    %s154 = sand.u32 %s44, 127
    %s155 = scalar_lea.vmem [#allocation2], %s153
    %v156 = vld [vmem:[%s155] sm:$0xff]
    %v157 = vld [vmem:[%s155 + $0x8] sm:$0xff]
    %v158 = vadd.f32 %v156, %v147
    %v159 = vadd.f32 %v157, %v150
    %v160 = vld [vmem:[%s2] sm:$0x1]
    %v162 = vlaneseq
    %v163 = vshrl.u32 %v162, 7
    %v164 = vsub.s32 0, %v163
    %v165 = vrot.slane %v160, %v164
    %v167 = vadd.f32 %v158, %v165
    %v168 = vadd.f32 %v159, %v165
    %169 = vst [vmem:[#allocation7] sm:$0xff] %v167
    %170 = vst [vmem:[#allocation7 + $0x8] sm:$0xff] %v168
    // Predicated region
    $region22: #{tpu_custom_call.1} parent=1 // pred_check
      _
    $region23: #{tpu_custom_call.1} parent=1 // pred_check_branch
      %172 = sbr.rel (0) target = $region25
    $region24: #{tpu_custom_call.1} parent=1 // pred_region
      %s174 = ssub.s32 256, 256
      %175 = vsyncadd [#allocation4], %s174
      %s176 = sshll.u32 [#allocation7], 4
      %s177 = int_to_ptr.vmem [resolvable:$true] %s176
      %182 = dma.vmem_to_hbm [thread:$0]  %s177, 256, %s3, [#allocation4], 128, 128, 8
    $region25: #{tpu_custom_call.1} parent=1 // pred_fallthru
      _
    // Predicated region
    $region26: #{tpu_custom_call.1} parent=1 // pred_check
      _
    $region27: #{tpu_custom_call.1} parent=1 // pred_check_branch
      %184 = sbr.rel (0) target = $region29
    $region28: #{tpu_custom_call.1} parent=1 // pred_region
      %185 = dma.done [#allocation4], 256
    $region29: #{tpu_custom_call.1} parent=1 // pred_fallthru
      _
    %186 = vsyncpa [#allocation3], 1
    %187 = vsyncpa [#allocation6], 1
    %188 = vsyncpa [#allocation4], 1

// kernel: tpu_custom_call.1
$region0: #{tpu_custom_call.1}
  #allocation0 [shape = 'u32[]', space=smem, size = 0x4, offset = 0x4, fixed_abs, tag = 'smem constant byte address 0x4 - core index']
  #allocation1 [shape = 'u32[144,128]{1,0:T(1,128)}', space=vmem, size = 0x12000, scoped, tag = 'internal scratch']
  %s0 = inlined_call_operand.hbm [shape: f32[16,128], index: 0, kind: input, shape index: {}]
  %s1 = inlined_call_operand.hbm [shape: bf16[128,128], index: 1, kind: input, shape index: {}]
  %s2 = inlined_call_operand.vmem [shape: f32[1,128], index: 2, kind: input, shape index: {}]
  %s3 = inlined_call_operand.hbm [shape: f32[16,128], index: 3, kind: output, shape index: {}]
  %s4 = sld [smem:[#allocation0]]
  $region30: #{tpu_custom_call.1} parent=0
    _
  %s6 = ssub.s32 1, %s4
  %s7 = scalar_select 0, %s6, %s4
  $region1: #{tpu_custom_call.1} parent=0
    #allocation2 [shape = 'u8[8192]{0}', space=vmem, size = 0x2000, scoped, tag = 'input window, operand 0, single buffered']
    #allocation3 [shape = 's32[1]{0}', space=sflag, size = 0x4, scoped, tag = 'scoped memory for tpu_custom_call.1']
    #allocation4 [shape = 's32[1]{0}', space=sflag, size = 0x4, scoped, tag = 'scoped memory for tpu_custom_call.1']
    #allocation5 [shape = 'u8[32768]{0}', space=vmem, size = 0x8000, scoped, tag = 'input window, operand 1, single buffered']
    #allocation6 [shape = 's32[1]{0}', space=sflag, size = 0x4, scoped, tag = 'scoped memory for tpu_custom_call.1']
    #allocation7 [shape = 'u8[8192]{0}', space=vmem, size = 0x2000, scoped, tag = 'output window, operand 0, single buffered']
    %8 = vsyncpa [#allocation3], 0
    %9 = vsyncpa [#allocation6], 0
    %10 = vsyncpa [#allocation4], 0
    // Predicated region
    $region2: #{tpu_custom_call.1} parent=1 // pred_check
      _
    $region3: #{tpu_custom_call.1} parent=1 // pred_check_branch
      %12 = sbr.rel (0) target = $region5
    $region4: #{tpu_custom_call.1} parent=1 // pred_region
      %s14 = ssub.s32 256, 256
      %15 = vsyncadd [#allocation3], %s14
      %s16 = sshll.u32 [#allocation2], 4
      %s17 = int_to_ptr.vmem [resolvable:$true] %s16
      %22 = dma.hbm_to_vmem [thread:$0]  %s0, 256, %s17, [#allocation3], 128, 128, 8
    $region5: #{tpu_custom_call.1} parent=1 // pred_fallthru
      _
    // Predicated region
    $region6: #{tpu_custom_call.1} parent=1 // pred_check
      _
    $region7: #{tpu_custom_call.1} parent=1 // pred_check_branch
      %24 = sbr.rel (0) target = $region9
    $region8: #{tpu_custom_call.1} parent=1 // pred_region
      %s26 = ssub.s32 1024, 1024
      %27 = vsyncadd [#allocation6], %s26
      %s28 = sshll.u32 [#allocation5], 4
      %s29 = int_to_ptr.vmem [resolvable:$true] %s28
      %34 = dma.hbm_to_vmem [thread:$0]  %s1, 1024, %s29, [#allocation6], 64, 64, 4
    $region9: #{tpu_custom_call.1} parent=1 // pred_fallthru
      _
    // Predicated region
    $region10: #{tpu_custom_call.1} parent=1 // pred_check
      _
    $region11: #{tpu_custom_call.1} parent=1 // pred_check_branch
      %36 = sbr.rel (0) target = $region13
    $region12: #{tpu_custom_call.1} parent=1 // pred_region
      _
    $region13: #{tpu_custom_call.1} parent=1 // pred_fallthru
      _
    // Predicated region
    $region14: #{tpu_custom_call.1} parent=1 // pred_check
      _
    $region15: #{tpu_custom_call.1} parent=1 // pred_check_branch
      %38 = sbr.rel (0) target = $region17
    $region16: #{tpu_custom_call.1} parent=1 // pred_region
      %39 = dma.done [#allocation3], 256
    $region17: #{tpu_custom_call.1} parent=1 // pred_fallthru
      _
    // Predicated region
    $region18: #{tpu_custom_call.1} parent=1 // pred_check
      _
    $region19: #{tpu_custom_call.1} parent=1 // pred_check_branch
      %41 = sbr.rel (0) target = $region21
    $region20: #{tpu_custom_call.1} parent=1 // pred_region
      %42 = dma.done [#allocation6], 1024
    $region21: #{tpu_custom_call.1} parent=1 // pred_fallthru
      _
    %s44 = smul.u32 0, 128
    %v45 = vld [vmem:[#allocation2] sm:$0xff]
    %v46 = vld [vmem:[#allocation2 + $0x8] sm:$0xff]
    %v47 = vpack.c.bf16 %v46, %v45
    %v48 = vld [vmem:[#allocation5] sm:$0xf]
    %v49 = vld [vmem:[#allocation5 + $0x4] sm:$0xf]
    %v50 = vld [vmem:[#allocation5 + $0x8] sm:$0xf]
    %v51 = vld [vmem:[#allocation5 + $0xc] sm:$0xf]
    %v52 = vld [vmem:[#allocation5 + $0x10] sm:$0xf]
    %v53 = vld [vmem:[#allocation5 + $0x14] sm:$0xf]
    %v54 = vld [vmem:[#allocation5 + $0x18] sm:$0xf]
    %v55 = vld [vmem:[#allocation5 + $0x1c] sm:$0xf]
    %v56 = vld [vmem:[#allocation5 + $0x20] sm:$0xf]
    %v57 = vld [vmem:[#allocation5 + $0x24] sm:$0xf]
    %v58 = vld [vmem:[#allocation5 + $0x28] sm:$0xf]
    %v59 = vld [vmem:[#allocation5 + $0x2c] sm:$0xf]
    %v60 = vld [vmem:[#allocation5 + $0x30] sm:$0xf]
    %v61 = vld [vmem:[#allocation5 + $0x34] sm:$0xf]
    %v62 = vld [vmem:[#allocation5 + $0x38] sm:$0xf]
    %v63 = vld [vmem:[#allocation5 + $0x3c] sm:$0xf]
    %v80 = vunpack.c.l.b16 %v48
    %v81 = vunpack.c.l.b16 %v49
    %v82 = vunpack.c.l.b16 %v50
    %v83 = vunpack.c.l.b16 %v51
    %v84 = vunpack.c.l.b16 %v52
    %v85 = vunpack.c.l.b16 %v53
    %v86 = vunpack.c.l.b16 %v54
    %v87 = vunpack.c.l.b16 %v55
    %v88 = vunpack.c.l.b16 %v56
    %v89 = vunpack.c.l.b16 %v57
    %v90 = vunpack.c.l.b16 %v58
    %v91 = vunpack.c.l.b16 %v59
    %v92 = vunpack.c.l.b16 %v60
    %v93 = vunpack.c.l.b16 %v61
    %v94 = vunpack.c.l.b16 %v62
    %v95 = vunpack.c.l.b16 %v63
    %v96 = vpack.c.b16 %v81, %v80
    %v97 = vpack.c.b16 %v83, %v82
    %v98 = vpack.c.b16 %v85, %v84
    %v99 = vpack.c.b16 %v87, %v86
    %v100 = vpack.c.b16 %v89, %v88
    %v101 = vpack.c.b16 %v91, %v90
    %v102 = vpack.c.b16 %v93, %v92
    %v103 = vpack.c.b16 %v95, %v94
    %112 = vmatprep.subr.bf16.mxu0 0
    %113 = vmatpush1.bf16.msra.mxu0 %v96
    %114 = vmatprep.subr.bf16.mxu0 0
    %115 = vmatpush1.bf16.msra.mxu0 %v97
    %116 = vmatprep.subr.bf16.mxu0 0
    %117 = vmatpush1.bf16.msra.mxu0 %v98
    %118 = vmatprep.subr.bf16.mxu0 0
    %119 = vmatpush1.bf16.msra.mxu0 %v99
    %120 = vmatprep.subr.bf16.mxu0 0
    %121 = vmatpush1.bf16.msra.mxu0 %v100
    %122 = vmatprep.subr.bf16.mxu0 0
    %123 = vmatpush1.bf16.msra.mxu0 %v101
    %124 = vmatprep.subr.bf16.mxu0 0
    %125 = vmatpush1.bf16.msra.mxu0 %v102
    %126 = vmatprep.subr.bf16.mxu0 0
    %127 = vmatpush1.bf16.msra.mxu0 %v103
    %128 = vmatprep.subr.bf16.mxu0 0
    %129 = vmatpush1.bf16.msra.mxu0 0
    %130 = vmatprep.subr.bf16.mxu0 0
    %131 = vmatpush1.bf16.msra.mxu0 0
    %132 = vmatprep.subr.bf16.mxu0 0
    %133 = vmatpush1.bf16.msra.mxu0 0
    %134 = vmatprep.subr.bf16.mxu0 0
    %135 = vmatpush1.bf16.msra.mxu0 0
    %136 = vmatprep.subr.bf16.mxu0 0
    %137 = vmatpush1.bf16.msra.mxu0 0
    %138 = vmatprep.subr.bf16.mxu0 0
    %139 = vmatpush1.bf16.msra.mxu0 0
    %140 = vmatprep.subr.bf16.mxu0 0
    %141 = vmatpush1.bf16.msra.mxu0 0
    %142 = vmatprep.subr.bf16.mxu0 0
    %143 = vmatpush1.bf16.msra.mxu0 0
    %144 = vmatprep.mubr.bf16.mxu0 0
    %145 = vmatmul.mubr.bf16.gmra.mrb[0].mxu0 %v47
    %v146 = vpop.f32.mrb[0].mxu0
    %v147 = vadd.f32 0.0, %v146
    %v148 = vpop.f32.mrb[0].mxu0
    %v149 = vpop.f32.mrb[0].mxu0
    %v150 = vadd.f32 0.0, %v149
    %v151 = vpop.f32.mrb[0].mxu0
    %152 = vdwg.mxu0
    %s153 = sshra.s32 %s44, 7
    %s154 = sand.u32 %s44, 127
    %s155 = scalar_lea.vmem [#allocation2], %s153
    %v156 = vld [vmem:[%s155] sm:$0xff]
    %v157 = vld [vmem:[%s155 + $0x8] sm:$0xff]
    %v158 = vadd.f32 %v156, %v147
    %v159 = vadd.f32 %v157, %v150
    %v160 = vld [vmem:[%s2] sm:$0x1]
    %v162 = vlaneseq
    %v163 = vshrl.u32 %v162, 7
    %v164 = vsub.s32 0, %v163
    %v165 = vrot.slane %v160, %v164
    %v167 = vadd.f32 %v158, %v165
    %v168 = vadd.f32 %v159, %v165
    %169 = vst [vmem:[#allocation7] sm:$0xff] %v167
    %170 = vst [vmem:[#allocation7 + $0x8] sm:$0xff] %v168
    // Predicated region
    $region22: #{tpu_custom_call.1} parent=1 // pred_check
      _
    $region23: #{tpu_custom_call.1} parent=1 // pred_check_branch
      %172 = sbr.rel (0) target = $region25
    $region24: #{tpu_custom_call.1} parent=1 // pred_region
      %s174 = ssub.s32 256, 256
      %175 = vsyncadd [#allocation4], %s174
      %s176 = sshll.u32 [#allocation7], 4
      %s177 = int_to_ptr.vmem [resolvable:$true] %s176
      %182 = dma.vmem_to_hbm [thread:$0]  %s177, 256, %s3, [#allocation4], 128, 128, 8
    $region25: #{tpu_custom_call.1} parent=1 // pred_fallthru
      _
    // Predicated region
    $region26: #{tpu_custom_call.1} parent=1 // pred_check
      _
    $region27: #{tpu_custom_call.1} parent=1 // pred_check_branch
      %184 = sbr.rel (0) target = $region29
    $region28: #{tpu_custom_call.1} parent=1 // pred_region
      %185 = dma.done [#allocation4], 256
    $region29: #{tpu_custom_call.1} parent=1 // pred_fallthru
      _
    %186 = vsyncpa [#allocation3], 1
    %187 = vsyncpa [#allocation6], 1
    %188 = vsyncpa [#allocation4], 1

</llo_original>
